<compile_context>
chip_gen: v5e
topology: v5e:2x2
jax: 0.10.0
libtpu: 0.0.40
codegen_flags: <defaults>
</compile_context>

<pallas_src>
import jax
import jax.numpy as jnp
from jax import lax
from jax.experimental import pallas as pl
from jax.experimental.pallas import tpu as pltpu


def intermat_kernel(mat_ref,                               # SMEM (num_mat,)
                    left_ref, right_ref,                   # VMEM (num_mat, N, D)
                    w1l_ref, b1l_ref, w2l_ref, b2l_ref,    # left MLP (ik folded)
                    w1r_ref, b1r_ref, w2r_ref, b2r_ref,    # right MLP
                    out_ref):                              # VMEM (NL, NR)
    num_mat, NL, D = left_ref.shape
    NR = right_ref.shape[1]

    # ---- left MLP (Linear -> ReLU -> Linear), batched over all num_mat ----
    # reshape merges leading dims only (NL, NR are sublane-aligned) -> no relayout
    xl = left_ref[...].reshape(num_mat * NL, D)
    hl = jnp.maximum(
        jnp.dot(xl, w1l_ref[...], preferred_element_type=jnp.float32)
        + b1l_ref[...], 0.0)
    lk = (jnp.dot(hl, w2l_ref[...], preferred_element_type=jnp.float32)
          + b2l_ref[...])                                  # (num_mat*NL, Kd)

    # ---- right MLP, same batching ----
    xr = right_ref[...].reshape(num_mat * NR, D)
    hr = jnp.maximum(
        jnp.dot(xr, w1r_ref[...], preferred_element_type=jnp.float32)
        + b1r_ref[...], 0.0)
    rk = (jnp.dot(hr, w2r_ref[...], preferred_element_type=jnp.float32)
          + b2r_ref[...])                                  # (num_mat*NR, Kd)

    Kd = lk.shape[1]
    lk3 = lk.reshape(num_mat, NL, Kd)
    rk3 = rk.reshape(num_mat, NR, Kd)

    # bilinear interaction: contract Kd on the last dim of both operands,
    # batched over num_mat (no transpose of rk materialized).
    s = lax.dot_general(lk3, rk3,
                        dimension_numbers=(((2,), (2,)), ((0,), (0,))),
                        preferred_element_type=jnp.float32)  # (num_mat, NL, NR)

    # per-matrix scaling + sum over num_mat, fully in-register
    acc = mat_ref[0] * s[0]
    for m in range(1, num_mat):
        acc = acc + mat_ref[m] * s[m]
    out_ref[...] = acc


def intermat_forward(left, right, params):
    num_mat, B, NL, D = left.shape
    NR = right.shape[2]
    H = params["w1l"].shape[1]
    Kd = params["w2l"].shape[1]

    # Fold inter_kernel into the left MLP's second linear (pure algebra):
    #   (h @ w2l + b2l) @ ik == h @ (w2l @ ik) + (b2l @ ik)
    w2l_eff = params["w2l"] @ params["ik"]
    b2l_eff = params["b2l"] @ params["ik"]

    def wspec(shape):
        return pl.BlockSpec(shape, lambda b: (0,) * len(shape))

    flops = (2 * num_mat * B * (NL + NR) * (D * H + H * Kd)   # both MLPs
             + 2 * num_mat * B * NL * NR * Kd)                # bilinear
    bytes_accessed = 4 * (left.size + right.size + num_mat
                          + 2 * (D * H + H + H * Kd + Kd)
                          + B * NL * NR)

    return pl.pallas_call(
        intermat_kernel,
        out_shape=jax.ShapeDtypeStruct((B, NL, NR), jnp.float32),
        grid=(B,),
        in_specs=[
            pl.BlockSpec(memory_space=pltpu.MemorySpace.SMEM),            # mat_kernel
            pl.BlockSpec((num_mat, None, NL, D), lambda b: (0, b, 0, 0)),  # left
            pl.BlockSpec((num_mat, None, NR, D), lambda b: (0, b, 0, 0)),  # right
            wspec((D, H)), wspec((1, H)), wspec((H, Kd)), wspec((1, Kd)),
            wspec((D, H)), wspec((1, H)), wspec((H, Kd)), wspec((1, Kd)),
        ],
        out_specs=pl.BlockSpec((None, NL, NR), lambda b: (b, 0, 0)),
        compiler_params=pltpu.CompilerParams(
            dimension_semantics=("parallel",)),
        cost_estimate=pl.CostEstimate(flops=flops, transcendentals=0,
                                      bytes_accessed=bytes_accessed),
    )(params["mat"], left, right,
      params["w1l"], params["b1l"], w2l_eff, b2l_eff,
      params["w1r"], params["b1r"], params["w2r"], params["b2r"])


if __name__ == "__main__":
    # Shapes implied by the forward pass: inputs are (num_mat, B, N, input_dim)
    num_mat, B, NL, NR = 3, 2, 16, 8
    D = 32                    # input_dim
    Kd = D                    # kernel_dim defaults to input_dim
    H = 2 * Kd                # hidden_dim defaults to 2 * kernel_dim

    key = jax.random.PRNGKey(0)
    ks = jax.random.split(key, 12)
    left = jax.random.normal(ks[0], (num_mat, B, NL, D), jnp.float32)
    right = jax.random.normal(ks[1], (num_mat, B, NR, D), jnp.float32)

    xavier_bound = (6.0 / (Kd + Kd)) ** 0.5
    params = dict(
        w1l=0.1 * jax.random.normal(ks[2], (D, H), jnp.float32),
        b1l=0.1 * jax.random.normal(ks[3], (1, H), jnp.float32),
        w2l=0.1 * jax.random.normal(ks[4], (H, Kd), jnp.float32),
        b2l=0.1 * jax.random.normal(ks[5], (1, Kd), jnp.float32),
        w1r=0.1 * jax.random.normal(ks[6], (D, H), jnp.float32),
        b1r=0.1 * jax.random.normal(ks[7], (1, H), jnp.float32),
        w2r=0.1 * jax.random.normal(ks[8], (H, Kd), jnp.float32),
        b2r=0.1 * jax.random.normal(ks[9], (1, Kd), jnp.float32),
        ik=jax.random.uniform(ks[10], (Kd, Kd), jnp.float32,
                              minval=-xavier_bound, maxval=xavier_bound),
        mat=0.1 * jax.random.normal(ks[11], (num_mat,), jnp.float32),
    )

    out = jax.block_until_ready(intermat_forward(left, right, params))

    # pure-JAX reference (original, un-folded parameterization)
    def mlp(x, w1, b1, w2, b2):
        return jnp.maximum(x @ w1 + b1, 0.0) @ w2 + b2

    lk = mlp(left, params["w1l"], params["b1l"], params["w2l"], params["b2l"])
    rk = mlp(right, params["w1r"], params["b1r"], params["w2r"], params["b2r"])
    ref = jnp.einsum("mbik,kl,mbjl->mbij", lk, params["ik"], rk)
    ref = (ref * params["mat"][:, None, None, None]).sum(0)

    assert out.shape == (B, NL, NR)
    assert jnp.allclose(out, ref, atol=1e-3, rtol=1e-3)
    print("KERNEL_OK")
</pallas_src>

<mosaic_0001>
module attributes {stable_mosaic.version = 11 : i64} {
  func.func @intermat_kernel(%arg0: i32, %arg1: memref<3xf32, #tpu.memory_space<smem>>, %arg2: memref<3x1x16x32xf32, #tpu.memory_space<vmem>>, %arg3: memref<3x1x8x32xf32, #tpu.memory_space<vmem>>, %arg4: memref<32x64xf32, #tpu.memory_space<vmem>>, %arg5: memref<1x64xf32, #tpu.memory_space<vmem>>, %arg6: memref<64x32xf32, #tpu.memory_space<vmem>>, %arg7: memref<1x32xf32, #tpu.memory_space<vmem>>, %arg8: memref<32x64xf32, #tpu.memory_space<vmem>>, %arg9: memref<1x64xf32, #tpu.memory_space<vmem>>, %arg10: memref<64x32xf32, #tpu.memory_space<vmem>>, %arg11: memref<1x32xf32, #tpu.memory_space<vmem>>, %arg12: memref<1x16x8xf32, #tpu.memory_space<vmem>>) attributes {dimension_semantics = [#tpu.dimension_semantics<parallel>], iteration_bounds = array<i64: 2>, scalar_prefetch = 0 : i64, scratch_operands = 0 : i64, tpu.core_type = #tpu.core_type<tc>, window_params = [{transform_indices = @transform_0, window_bounds = array<i64: 3>}, {transform_indices = @transform_1, window_bounds = array<i64: 3, 1, 16, 32>}, {transform_indices = @transform_2, window_bounds = array<i64: 3, 1, 8, 32>}, {pipeline_mode = #tpu.pipeline_mode<synchronous>, transform_indices = @transform_3, window_bounds = array<i64: 32, 64>}, {pipeline_mode = #tpu.pipeline_mode<synchronous>, transform_indices = @transform_4, window_bounds = array<i64: 1, 64>}, {pipeline_mode = #tpu.pipeline_mode<synchronous>, transform_indices = @transform_5, window_bounds = array<i64: 64, 32>}, {pipeline_mode = #tpu.pipeline_mode<synchronous>, transform_indices = @transform_6, window_bounds = array<i64: 1, 32>}, {pipeline_mode = #tpu.pipeline_mode<synchronous>, transform_indices = @transform_7, window_bounds = array<i64: 32, 64>}, {pipeline_mode = #tpu.pipeline_mode<synchronous>, transform_indices = @transform_8, window_bounds = array<i64: 1, 64>}, {pipeline_mode = #tpu.pipeline_mode<synchronous>, transform_indices = @transform_9, window_bounds = array<i64: 64, 32>}, {pipeline_mode = #tpu.pipeline_mode<synchronous>, transform_indices = @transform_10, window_bounds = array<i64: 1, 32>}, {transform_indices = @transform_11, window_bounds = array<i64: 1, 16, 8>}]} {
    %c0 = arith.constant 0 : index
    %c0_0 = arith.constant 0 : index
    %c0_1 = arith.constant 0 : index
    %c0_2 = arith.constant 0 : index
    %0 = vector.load %arg2[%c0, %c0_0, %c0_1, %c0_2] : memref<3x1x16x32xf32, #tpu.memory_space<vmem>>, vector<3x1x16x32xf32>
    %1 = vector.shape_cast %0 : vector<3x1x16x32xf32> to vector<3x16x32xf32>
    %2 = vector.shape_cast %1 : vector<3x16x32xf32> to vector<48x32xf32>
    %c0_3 = arith.constant 0 : index
    %c0_4 = arith.constant 0 : index
    %3 = vector.load %arg4[%c0_3, %c0_4] : memref<32x64xf32, #tpu.memory_space<vmem>>, vector<32x64xf32>
    %cst = arith.constant dense<0.000000e+00> : vector<48x64xf32>
    %4 = tpu.matmul %2, %3, %cst {dimension_numbers = #tpu.dot_dimension_numbers<[1], [0], [0], [1], [0, 0, 1, 1], [], []>} : vector<48x32xf32>, vector<32x64xf32>, vector<48x64xf32> -> vector<48x64xf32>
    %c0_5 = arith.constant 0 : index
    %c0_6 = arith.constant 0 : index
    %5 = vector.load %arg5[%c0_5, %c0_6] : memref<1x64xf32, #tpu.memory_space<vmem>>, vector<1x64xf32>
    %6 = vector.broadcast %5 : vector<1x64xf32> to vector<48x64xf32>
    %7 = arith.addf %4, %6 : vector<48x64xf32>
    %cst_7 = arith.constant 0.000000e+00 : f32
    %8 = vector.broadcast %cst_7 : f32 to vector<48x64xf32>
    %9 = arith.maximumf %7, %8 : vector<48x64xf32>
    %c0_8 = arith.constant 0 : index
    %c0_9 = arith.constant 0 : index
    %10 = vector.load %arg6[%c0_8, %c0_9] : memref<64x32xf32, #tpu.memory_space<vmem>>, vector<64x32xf32>
    %cst_10 = arith.constant dense<0.000000e+00> : vector<48x32xf32>
    %11 = tpu.matmul %9, %10, %cst_10 {dimension_numbers = #tpu.dot_dimension_numbers<[1], [0], [0], [1], [0, 0, 1, 1], [], []>} : vector<48x64xf32>, vector<64x32xf32>, vector<48x32xf32> -> vector<48x32xf32>
    %c0_11 = arith.constant 0 : index
    %c0_12 = arith.constant 0 : index
    %12 = vector.load %arg7[%c0_11, %c0_12] : memref<1x32xf32, #tpu.memory_space<vmem>>, vector<1x32xf32>
    %13 = vector.broadcast %12 : vector<1x32xf32> to vector<48x32xf32>
    %14 = arith.addf %11, %13 : vector<48x32xf32>
    %c0_13 = arith.constant 0 : index
    %c0_14 = arith.constant 0 : index
    %c0_15 = arith.constant 0 : index
    %c0_16 = arith.constant 0 : index
    %15 = vector.load %arg3[%c0_13, %c0_14, %c0_15, %c0_16] : memref<3x1x8x32xf32, #tpu.memory_space<vmem>>, vector<3x1x8x32xf32>
    %16 = vector.shape_cast %15 : vector<3x1x8x32xf32> to vector<3x8x32xf32>
    %17 = vector.shape_cast %16 : vector<3x8x32xf32> to vector<24x32xf32>
    %c0_17 = arith.constant 0 : index
    %c0_18 = arith.constant 0 : index
    %18 = vector.load %arg8[%c0_17, %c0_18] : memref<32x64xf32, #tpu.memory_space<vmem>>, vector<32x64xf32>
    %cst_19 = arith.constant dense<0.000000e+00> : vector<24x64xf32>
    %19 = tpu.matmul %17, %18, %cst_19 {dimension_numbers = #tpu.dot_dimension_numbers<[1], [0], [0], [1], [0, 0, 1, 1], [], []>} : vector<24x32xf32>, vector<32x64xf32>, vector<24x64xf32> -> vector<24x64xf32>
    %c0_20 = arith.constant 0 : index
    %c0_21 = arith.constant 0 : index
    %20 = vector.load %arg9[%c0_20, %c0_21] : memref<1x64xf32, #tpu.memory_space<vmem>>, vector<1x64xf32>
    %21 = vector.broadcast %20 : vector<1x64xf32> to vector<24x64xf32>
    %22 = arith.addf %19, %21 : vector<24x64xf32>
    %cst_22 = arith.constant 0.000000e+00 : f32
    %23 = vector.broadcast %cst_22 : f32 to vector<24x64xf32>
    %24 = arith.maximumf %22, %23 : vector<24x64xf32>
    %c0_23 = arith.constant 0 : index
    %c0_24 = arith.constant 0 : index
    %25 = vector.load %arg10[%c0_23, %c0_24] : memref<64x32xf32, #tpu.memory_space<vmem>>, vector<64x32xf32>
    %cst_25 = arith.constant dense<0.000000e+00> : vector<24x32xf32>
    %26 = tpu.matmul %24, %25, %cst_25 {dimension_numbers = #tpu.dot_dimension_numbers<[1], [0], [0], [1], [0, 0, 1, 1], [], []>} : vector<24x64xf32>, vector<64x32xf32>, vector<24x32xf32> -> vector<24x32xf32>
    %c0_26 = arith.constant 0 : index
    %c0_27 = arith.constant 0 : index
    %27 = vector.load %arg11[%c0_26, %c0_27] : memref<1x32xf32, #tpu.memory_space<vmem>>, vector<1x32xf32>
    %28 = vector.broadcast %27 : vector<1x32xf32> to vector<24x32xf32>
    %29 = arith.addf %26, %28 : vector<24x32xf32>
    %30 = vector.shape_cast %14 : vector<48x32xf32> to vector<3x16x32xf32>
    %31 = vector.shape_cast %29 : vector<24x32xf32> to vector<3x8x32xf32>
    %cst_28 = arith.constant dense<0.000000e+00> : vector<3x16x8xf32>
    %32 = tpu.matmul %30, %31, %cst_28 {dimension_numbers = #tpu.dot_dimension_numbers<[2], [2], [1], [1], [0, 0, 0, 1, 1, 1], [0], [0]>} : vector<3x16x32xf32>, vector<3x8x32xf32>, vector<3x16x8xf32> -> vector<3x16x8xf32>
    %c0_29 = arith.constant 0 : index
    %33 = memref.load %arg1[%c0_29] : memref<3xf32, #tpu.memory_space<smem>>
    %34 = vector.extract_strided_slice %32 {offsets = [0, 0, 0], sizes = [1, 16, 8], strides = [1, 1, 1]} : vector<3x16x8xf32> to vector<1x16x8xf32>
    %35 = vector.shape_cast %34 : vector<1x16x8xf32> to vector<16x8xf32>
    %36 = vector.broadcast %33 : f32 to vector<16x8xf32>
    %37 = arith.mulf %36, %35 : vector<16x8xf32>
    %c1 = arith.constant 1 : index
    %38 = memref.load %arg1[%c1] : memref<3xf32, #tpu.memory_space<smem>>
    %39 = vector.extract_strided_slice %32 {offsets = [1, 0, 0], sizes = [1, 16, 8], strides = [1, 1, 1]} : vector<3x16x8xf32> to vector<1x16x8xf32>
    %40 = vector.shape_cast %39 : vector<1x16x8xf32> to vector<16x8xf32>
    %41 = vector.broadcast %38 : f32 to vector<16x8xf32>
    %42 = arith.mulf %41, %40 : vector<16x8xf32>
    %43 = arith.addf %37, %42 : vector<16x8xf32>
    %c2 = arith.constant 2 : index
    %44 = memref.load %arg1[%c2] : memref<3xf32, #tpu.memory_space<smem>>
    %45 = vector.extract_strided_slice %32 {offsets = [2, 0, 0], sizes = [1, 16, 8], strides = [1, 1, 1]} : vector<3x16x8xf32> to vector<1x16x8xf32>
    %46 = vector.shape_cast %45 : vector<1x16x8xf32> to vector<16x8xf32>
    %47 = vector.broadcast %44 : f32 to vector<16x8xf32>
    %48 = arith.mulf %47, %46 : vector<16x8xf32>
    %49 = arith.addf %43, %48 : vector<16x8xf32>
    %c0_30 = arith.constant 0 : index
    %c0_31 = arith.constant 0 : index
    %c0_32 = arith.constant 0 : index
    %50 = vector.load %arg12[%c0_30, %c0_31, %c0_32] : memref<1x16x8xf32, #tpu.memory_space<vmem>>, vector<1x16x8xf32>
    %51 = vector.shape_cast %50 : vector<1x16x8xf32> to vector<16x8xf32>
    %52 = vector.shape_cast %49 : vector<16x8xf32> to vector<1x16x8xf32>
    tpu.vector_store %arg12[%c0_30, %c0_31, %c0_32], %52 {strides = array<i32>} : memref<1x16x8xf32, #tpu.memory_space<vmem>>, vector<1x16x8xf32>,
    return
  }
  func.func @transform_0(%arg0: i32) -> i32 {
    %c0_i32 = arith.constant 0 : i32
    %c0_i32_0 = arith.constant 0 : i32
    return %c0_i32 : i32
  }
  func.func @transform_1(%arg0: i32) -> (i32, i32, i32, i32) {
    %c0_i32 = arith.constant 0 : i32
    %c0_i32_0 = arith.constant 0 : i32
    %c0_i32_1 = arith.constant 0 : i32
    %c0_i32_2 = arith.constant 0 : i32
    return %c0_i32, %arg0, %c0_i32_0, %c0_i32_1 : i32, i32, i32, i32
  }
  func.func @transform_2(%arg0: i32) -> (i32, i32, i32, i32) {
    %c0_i32 = arith.constant 0 : i32
    %c0_i32_0 = arith.constant 0 : i32
    %c0_i32_1 = arith.constant 0 : i32
    %c0_i32_2 = arith.constant 0 : i32
    return %c0_i32, %arg0, %c0_i32_0, %c0_i32_1 : i32, i32, i32, i32
  }
  func.func @transform_3(%arg0: i32) -> (i32, i32) {
    %c0_i32 = arith.constant 0 : i32
    %c0_i32_0 = arith.constant 0 : i32
    %c0_i32_1 = arith.constant 0 : i32
    return %c0_i32, %c0_i32_0 : i32, i32
  }
  func.func @transform_4(%arg0: i32) -> (i32, i32) {
    %c0_i32 = arith.constant 0 : i32
    %c0_i32_0 = arith.constant 0 : i32
    %c0_i32_1 = arith.constant 0 : i32
    return %c0_i32, %c0_i32_0 : i32, i32
  }
  func.func @transform_5(%arg0: i32) -> (i32, i32) {
    %c0_i32 = arith.constant 0 : i32
    %c0_i32_0 = arith.constant 0 : i32
    %c0_i32_1 = arith.constant 0 : i32
    return %c0_i32, %c0_i32_0 : i32, i32
  }
  func.func @transform_6(%arg0: i32) -> (i32, i32) {
    %c0_i32 = arith.constant 0 : i32
    %c0_i32_0 = arith.constant 0 : i32
    %c0_i32_1 = arith.constant 0 : i32
    return %c0_i32, %c0_i32_0 : i32, i32
  }
  func.func @transform_7(%arg0: i32) -> (i32, i32) {
    %c0_i32 = arith.constant 0 : i32
    %c0_i32_0 = arith.constant 0 : i32
    %c0_i32_1 = arith.constant 0 : i32
    return %c0_i32, %c0_i32_0 : i32, i32
  }
  func.func @transform_8(%arg0: i32) -> (i32, i32) {
    %c0_i32 = arith.constant 0 : i32
    %c0_i32_0 = arith.constant 0 : i32
    %c0_i32_1 = arith.constant 0 : i32
    return %c0_i32, %c0_i32_0 : i32, i32
  }
  func.func @transform_9(%arg0: i32) -> (i32, i32) {
    %c0_i32 = arith.constant 0 : i32
    %c0_i32_0 = arith.constant 0 : i32
    %c0_i32_1 = arith.constant 0 : i32
    return %c0_i32, %c0_i32_0 : i32, i32
  }
  func.func @transform_10(%arg0: i32) -> (i32, i32) {
    %c0_i32 = arith.constant 0 : i32
    %c0_i32_0 = arith.constant 0 : i32
    %c0_i32_1 = arith.constant 0 : i32
    return %c0_i32, %c0_i32_0 : i32, i32
  }
  func.func @transform_11(%arg0: i32) -> (i32, i32, i32) {
    %c0_i32 = arith.constant 0 : i32
    %c0_i32_0 = arith.constant 0 : i32
    %c0_i32_1 = arith.constant 0 : i32
    return %arg0, %c0_i32, %c0_i32_0 : i32, i32, i32
  }
}

</mosaic_0001>

<llo_original>
// kernel: tpu_custom_call.1
$region0: #{tpu_custom_call.1}
  #allocation0 [shape = 'u32[]', space=smem, size = 0x4, offset = 0x4, fixed_abs, tag = 'smem constant byte address 0x4 - core index']
  #allocation1 [shape = 'u32[72,128]{1,0:T(1,128)}', space=vmem, size = 0x9000, scoped, tag = 'internal scratch']
  %s0 = inlined_call_operand.vmem [shape: f32[3], index: 0, kind: input, shape index: {}]
  %s1 = inlined_call_operand.vmem [shape: f32[3,2,16,32], index: 1, kind: input, shape index: {}]
  %s2 = inlined_call_operand.vmem [shape: f32[3,2,8,32], index: 2, kind: input, shape index: {}]
  %s3 = inlined_call_operand.hbm [shape: f32[32,64], index: 3, kind: input, shape index: {}]
  %s4 = inlined_call_operand.vmem [shape: f32[1,64], index: 4, kind: input, shape index: {}]
  %s5 = inlined_call_operand.vmem [shape: f32[64,32], index: 5, kind: input, shape index: {}]
  %s6 = inlined_call_operand.vmem [shape: f32[1,32], index: 6, kind: input, shape index: {}]
  %s7 = inlined_call_operand.hbm [shape: f32[32,64], index: 7, kind: input, shape index: {}]
  %s8 = inlined_call_operand.vmem [shape: f32[1,64], index: 8, kind: input, shape index: {}]
  %s9 = inlined_call_operand.vmem [shape: f32[64,32], index: 9, kind: input, shape index: {}]
  %s10 = inlined_call_operand.vmem [shape: f32[1,32], index: 10, kind: input, shape index: {}]
  %s11 = inlined_call_operand.vmem [shape: f32[2,16,8], index: 11, kind: output, shape index: {}]
  %s12 = sld [smem:[#allocation0]]
  $region165: #{tpu_custom_call.1} parent=0
    _
  %s14 = ssub.s32 1, %s12
  %s15 = scalar_select 0, %s14, %s12
  $region1: #{tpu_custom_call.1} parent=0
    #allocation2 [shape = 'u8[512]{0}', space=smem, size = 0x200, scoped, tag = 'input window, operand 0, single buffered']
    #allocation3 [shape = 's32[2]{0}', space=sflag, size = 0x8, scoped, tag = 'scoped memory for tpu_custom_call.1']
    #allocation4 [shape = 's32[2]{0}', space=sflag, size = 0x8, scoped, tag = 'scoped memory for tpu_custom_call.1']
    #allocation5 [shape = 'u8[49152]{0}', space=vmem, size = 0xc000, scoped, tag = 'input window, operand 1']
    #allocation6 [shape = 'u8[24576]{0}', space=vmem, size = 0x6000, scoped, tag = 'input window, operand 2']
    #allocation7 [shape = 'u8[16384]{0}', space=vmem, size = 0x4000, scoped, tag = 'input window, operand 3, single buffered']
    #allocation8 [shape = 'u8[16384]{0}', space=vmem, size = 0x4000, scoped, tag = 'input window, operand 7, single buffered']
    #allocation9 [shape = 's32[1]{0}', space=sflag, size = 0x4, scoped, tag = 'scoped memory for tpu_custom_call.1']
    %16 = vsyncpa [#allocation4], 0
    %17 = vsyncpa [#allocation3], 0
    %18 = vsyncpa [#allocation9], 0
    loop: start=0, step=1, limit=4
    $region2: #{tpu_custom_call.1} parent=1 // loop_pre_header
      _
    $region3: #{tpu_custom_call.1} parent=1 // loop_header
      %s20 = sphi 0, %s24
      %p21 = scmp.ge.s32.totalorder %s20, 4
      %s28 = sphi 0, %s28
      %s30 = sphi 0, %s28
      %s31 = sphi 0, %s30
      %s45 = sphi 0, %s31
      %s51 = sphi 0, %s53
      %s54 = sphi 0, %s51
      %s55 = sphi 0, %s54
      %s71 = sphi 0, %s55
      %s77 = sphi 0, %s79
      %s80 = sphi 0, %s77
      %s81 = sphi 0, %s80
      %s97 = sphi 0, %s81
      %s101 = sphi 0, %s101
      %s103 = sphi 0, %s101
      %s104 = sphi 0, %s103
      %s118 = sphi 0, %s104
      %s122 = sphi 0, %s122
      %s124 = sphi 0, %s122
      %s125 = sphi 0, %s124
      %s139 = sphi 0, %s125
      %s143 = sphi 0, %s143
      %s145 = sphi 0, %s143
      %s146 = sphi 0, %s145
      %s160 = sphi 0, %s146
      %s164 = sphi 0, %s164
      %s166 = sphi 0, %s164
      %s167 = sphi 0, %s166
      %s181 = sphi 0, %s167
      %s185 = sphi 0, %s185
      %s187 = sphi 0, %s185
      %s188 = sphi 0, %s187
      %s202 = sphi 0, %s188
      %s206 = sphi 0, %s206
      %s208 = sphi 0, %s206
      %s209 = sphi 0, %s208
      %s223 = sphi 0, %s209
      %s227 = sphi 0, %s227
      %s229 = sphi 0, %s227
      %s230 = sphi 0, %s229
      %s244 = sphi 0, %s230
      %s248 = sphi 0, %s248
      %s250 = sphi 0, %s248
      %s251 = sphi 0, %s250
      %s265 = sphi 0, %s251
      %s271 = sphi 0, %s273
      %s274 = sphi 0, %s271
      %s275 = sphi 0, %s274
      %s291 = sphi 0, %s275
    $region4: #{tpu_custom_call.1} parent=1 // loop_header_branch
      %23 = sbr.rel (%p21) target = $region8
    $region5: #{tpu_custom_call.1} parent=1 // loop_body
      %s25 = ssub.s32 %s20, 1
      %s26 = ssub.s32 %s20, 2
      %s27 = sadd.s32 %s20, 1
      %s29 = sadd.s32 %s28, 1
      %p32 = scmp.eq.s32.totalorder %s20, 1
      %p33 = scmp.ne.s32.totalorder %s28, %s30
      %p34 = scmp.eq.s32.totalorder %s20, 0
      %p35 = por %p33, %p34
      %p36 = scmp.ne.s32.totalorder %s28, %s30
      %p37 = scmp.eq.s32.totalorder %s25, 1
      %p38 = por %p36, %p37
      %p39 = scmp.ne.s32.totalorder %s30, %s31
      %p40 = scmp.eq.s32.totalorder %s25, 0
      %p41 = por %p39, %p40
      %p42 = scmp.ne.s32.totalorder %s30, %s31
      %p43 = scmp.eq.s32.totalorder %s26, 1
      %p44 = por %p42, %p43
      %p46 = scmp.ne.s32.totalorder %s31, %s45
      %p47 = scmp.eq.s32.totalorder %s26, 0
      %p48 = por %p46, %p47
      %s49 = ssub.s32 %s20, %s27
      %p50 = scmp.eq.s32.totalorder %s49, 0
      %s52 = sadd.s32 %s51, 1
      %s53 = scalar_select %p50, %s51, %s52
      %p56 = pneg %p50
      %p57 = scmp.eq.s32.totalorder %s20, 1
      %p58 = por %p56, %p57
      %p59 = scmp.ne.s32.totalorder %s51, %s54
      %p60 = scmp.eq.s32.totalorder %s20, 0
      %p61 = por %p59, %p60
      %p62 = scmp.ne.s32.totalorder %s51, %s54
      %p63 = scmp.eq.s32.totalorder %s25, 1
      %p64 = por %p62, %p63
      %p65 = scmp.ne.s32.totalorder %s54, %s55
      %p66 = scmp.eq.s32.totalorder %s25, 0
      %p67 = por %p65, %p66
      %p68 = scmp.ne.s32.totalorder %s54, %s55
      %p69 = scmp.eq.s32.totalorder %s26, 1
      %p70 = por %p68, %p69
      %p72 = scmp.ne.s32.totalorder %s55, %s71
      %p73 = scmp.eq.s32.totalorder %s26, 0
      %p74 = por %p72, %p73
      %s75 = ssub.s32 %s20, %s27
      %p76 = scmp.eq.s32.totalorder %s75, 0
      %s78 = sadd.s32 %s77, 1
      %s79 = scalar_select %p76, %s77, %s78
      %p82 = pneg %p76
      %p83 = scmp.eq.s32.totalorder %s20, 1
      %p84 = por %p82, %p83
      %p85 = scmp.ne.s32.totalorder %s77, %s80
      %p86 = scmp.eq.s32.totalorder %s20, 0
      %p87 = por %p85, %p86
      %p88 = scmp.ne.s32.totalorder %s77, %s80
      %p89 = scmp.eq.s32.totalorder %s25, 1
      %p90 = por %p88, %p89
      %p91 = scmp.ne.s32.totalorder %s80, %s81
      %p92 = scmp.eq.s32.totalorder %s25, 0
      %p93 = por %p91, %p92
      %p94 = scmp.ne.s32.totalorder %s80, %s81
      %p95 = scmp.eq.s32.totalorder %s26, 1
      %p96 = por %p94, %p95
      %p98 = scmp.ne.s32.totalorder %s81, %s97
      %p99 = scmp.eq.s32.totalorder %s26, 0
      %p100 = por %p98, %p99
      %s102 = sadd.s32 %s101, 1
      %p105 = scmp.eq.s32.totalorder %s20, 1
      %p106 = scmp.ne.s32.totalorder %s101, %s103
      %p107 = scmp.eq.s32.totalorder %s20, 0
      %p108 = por %p106, %p107
      %p109 = scmp.ne.s32.totalorder %s101, %s103
      %p110 = scmp.eq.s32.totalorder %s25, 1
      %p111 = por %p109, %p110
      %p112 = scmp.ne.s32.totalorder %s103, %s104
      %p113 = scmp.eq.s32.totalorder %s25, 0
      %p114 = por %p112, %p113
      %p115 = scmp.ne.s32.totalorder %s103, %s104
      %p116 = scmp.eq.s32.totalorder %s26, 1
      %p117 = por %p115, %p116
      %p119 = scmp.ne.s32.totalorder %s104, %s118
      %p120 = scmp.eq.s32.totalorder %s26, 0
      %p121 = por %p119, %p120
      %s123 = sadd.s32 %s122, 1
      %p126 = scmp.eq.s32.totalorder %s20, 1
      %p127 = scmp.ne.s32.totalorder %s122, %s124
      %p128 = scmp.eq.s32.totalorder %s20, 0
      %p129 = por %p127, %p128
      %p130 = scmp.ne.s32.totalorder %s122, %s124
      %p131 = scmp.eq.s32.totalorder %s25, 1
      %p132 = por %p130, %p131
      %p133 = scmp.ne.s32.totalorder %s124, %s125
      %p134 = scmp.eq.s32.totalorder %s25, 0
      %p135 = por %p133, %p134
      %p136 = scmp.ne.s32.totalorder %s124, %s125
      %p137 = scmp.eq.s32.totalorder %s26, 1
      %p138 = por %p136, %p137
      %p140 = scmp.ne.s32.totalorder %s125, %s139
      %p141 = scmp.eq.s32.totalorder %s26, 0
      %p142 = por %p140, %p141
      %s144 = sadd.s32 %s143, 1
      %p147 = scmp.eq.s32.totalorder %s20, 1
      %p148 = scmp.ne.s32.totalorder %s143, %s145
      %p149 = scmp.eq.s32.totalorder %s20, 0
      %p150 = por %p148, %p149
      %p151 = scmp.ne.s32.totalorder %s143, %s145
      %p152 = scmp.eq.s32.totalorder %s25, 1
      %p153 = por %p151, %p152
      %p154 = scmp.ne.s32.totalorder %s145, %s146
      %p155 = scmp.eq.s32.totalorder %s25, 0
      %p156 = por %p154, %p155
      %p157 = scmp.ne.s32.totalorder %s145, %s146
      %p158 = scmp.eq.s32.totalorder %s26, 1
      %p159 = por %p157, %p158
      %p161 = scmp.ne.s32.totalorder %s146, %s160
      %p162 = scmp.eq.s32.totalorder %s26, 0
      %p163 = por %p161, %p162
      %s165 = sadd.s32 %s164, 1
      %p168 = scmp.eq.s32.totalorder %s20, 1
      %p169 = scmp.ne.s32.totalorder %s164, %s166
      %p170 = scmp.eq.s32.totalorder %s20, 0
      %p171 = por %p169, %p170
      %p172 = scmp.ne.s32.totalorder %s164, %s166
      %p173 = scmp.eq.s32.totalorder %s25, 1
      %p174 = por %p172, %p173
      %p175 = scmp.ne.s32.totalorder %s166, %s167
      %p176 = scmp.eq.s32.totalorder %s25, 0
      %p177 = por %p175, %p176
      %p178 = scmp.ne.s32.totalorder %s166, %s167
      %p179 = scmp.eq.s32.totalorder %s26, 1
      %p180 = por %p178, %p179
      %p182 = scmp.ne.s32.totalorder %s167, %s181
      %p183 = scmp.eq.s32.totalorder %s26, 0
      %p184 = por %p182, %p183
      %s186 = sadd.s32 %s185, 1
      %p189 = scmp.eq.s32.totalorder %s20, 1
      %p190 = scmp.ne.s32.totalorder %s185, %s187
      %p191 = scmp.eq.s32.totalorder %s20, 0
      %p192 = por %p190, %p191
      %p193 = scmp.ne.s32.totalorder %s185, %s187
      %p194 = scmp.eq.s32.totalorder %s25, 1
      %p195 = por %p193, %p194
      %p196 = scmp.ne.s32.totalorder %s187, %s188
      %p197 = scmp.eq.s32.totalorder %s25, 0
      %p198 = por %p196, %p197
      %p199 = scmp.ne.s32.totalorder %s187, %s188
      %p200 = scmp.eq.s32.totalorder %s26, 1
      %p201 = por %p199, %p200
      %p203 = scmp.ne.s32.totalorder %s188, %s202
      %p204 = scmp.eq.s32.totalorder %s26, 0
      %p205 = por %p203, %p204
      %s207 = sadd.s32 %s206, 1
      %p210 = scmp.eq.s32.totalorder %s20, 1
      %p211 = scmp.ne.s32.totalorder %s206, %s208
      %p212 = scmp.eq.s32.totalorder %s20, 0
      %p213 = por %p211, %p212
      %p214 = scmp.ne.s32.totalorder %s206, %s208
      %p215 = scmp.eq.s32.totalorder %s25, 1
      %p216 = por %p214, %p215
      %p217 = scmp.ne.s32.totalorder %s208, %s209
      %p218 = scmp.eq.s32.totalorder %s25, 0
      %p219 = por %p217, %p218
      %p220 = scmp.ne.s32.totalorder %s208, %s209
      %p221 = scmp.eq.s32.totalorder %s26, 1
      %p222 = por %p220, %p221
      %p224 = scmp.ne.s32.totalorder %s209, %s223
      %p225 = scmp.eq.s32.totalorder %s26, 0
      %p226 = por %p224, %p225
      %s228 = sadd.s32 %s227, 1
      %p231 = scmp.eq.s32.totalorder %s20, 1
      %p232 = scmp.ne.s32.totalorder %s227, %s229
      %p233 = scmp.eq.s32.totalorder %s20, 0
      %p234 = por %p232, %p233
      %p235 = scmp.ne.s32.totalorder %s227, %s229
      %p236 = scmp.eq.s32.totalorder %s25, 1
      %p237 = por %p235, %p236
      %p238 = scmp.ne.s32.totalorder %s229, %s230
      %p239 = scmp.eq.s32.totalorder %s25, 0
      %p240 = por %p238, %p239
      %p241 = scmp.ne.s32.totalorder %s229, %s230
      %p242 = scmp.eq.s32.totalorder %s26, 1
      %p243 = por %p241, %p242
      %p245 = scmp.ne.s32.totalorder %s230, %s244
      %p246 = scmp.eq.s32.totalorder %s26, 0
      %p247 = por %p245, %p246
      %s249 = sadd.s32 %s248, 1
      %p252 = scmp.eq.s32.totalorder %s20, 1
      %p253 = scmp.ne.s32.totalorder %s248, %s250
      %p254 = scmp.eq.s32.totalorder %s20, 0
      %p255 = por %p253, %p254
      %p256 = scmp.ne.s32.totalorder %s248, %s250
      %p257 = scmp.eq.s32.totalorder %s25, 1
      %p258 = por %p256, %p257
      %p259 = scmp.ne.s32.totalorder %s250, %s251
      %p260 = scmp.eq.s32.totalorder %s25, 0
      %p261 = por %p259, %p260
      %p262 = scmp.ne.s32.totalorder %s250, %s251
      %p263 = scmp.eq.s32.totalorder %s26, 1
      %p264 = por %p262, %p263
      %p266 = scmp.ne.s32.totalorder %s251, %s265
      %p267 = scmp.eq.s32.totalorder %s26, 0
      %p268 = por %p266, %p267
      %s269 = ssub.s32 %s20, %s27
      %p270 = scmp.eq.s32.totalorder %s269, 0
      %s272 = sadd.s32 %s271, 1
      %s273 = scalar_select %p270, %s271, %s272
      %p276 = pneg %p270
      %p277 = scmp.eq.s32.totalorder %s20, 1
      %p278 = por %p276, %p277
      %p279 = scmp.ne.s32.totalorder %s271, %s274
      %p280 = scmp.eq.s32.totalorder %s20, 0
      %p281 = por %p279, %p280
      %p282 = scmp.ne.s32.totalorder %s271, %s274
      %p283 = scmp.eq.s32.totalorder %s25, 1
      %p284 = por %p282, %p283
      %p285 = scmp.ne.s32.totalorder %s274, %s275
      %p286 = scmp.eq.s32.totalorder %s25, 0
      %p287 = por %p285, %p286
      %p288 = scmp.ne.s32.totalorder %s274, %s275
      %p289 = scmp.eq.s32.totalorder %s26, 1
      %p290 = por %p288, %p289
      %p292 = scmp.ne.s32.totalorder %s275, %s291
      %p293 = scmp.eq.s32.totalorder %s26, 0
      %p294 = por %p292, %p293
      %p295 = scmp.le.s32.totalorder 1, %s20
      %p296 = scmp.lt.s32.totalorder %s20, 3
      %p297 = pnand %p295, %p296
      %p298 = pneg %p297
      // Predicated region
      $region9: #{tpu_custom_call.1} parent=5 // pred_check
        _
      $region10: #{tpu_custom_call.1} parent=5 // pred_check_branch
        %300 = sbr.rel (%p297) target = $region12
      $region11: #{tpu_custom_call.1} parent=5 // pred_region
        %s301 = ssub.s32 %s20, 1
        // Predicated region
        $region13: #{tpu_custom_call.1} parent=11 // pred_check
          %p302 = pneg %p41
        $region14: #{tpu_custom_call.1} parent=11 // pred_check_branch
          %304 = sbr.rel (%p302) target = $region16
        $region15: #{tpu_custom_call.1} parent=11 // pred_region
          %306 = vsyncadd [#allocation4], 0
          %s308 = sshll.u32 %s0, 4
          %s309 = int_to_ptr.vmem [resolvable:$true] %s308
          %311 = dma.vmem_to_smem %s309, 16, [#allocation2], [#allocation4]
        $region16: #{tpu_custom_call.1} parent=11 // pred_fallthru
          _
        // Predicated region
        $region17: #{tpu_custom_call.1} parent=11 // pred_check
          %p312 = pneg %p114
        $region18: #{tpu_custom_call.1} parent=11 // pred_check_branch
          %314 = sbr.rel (%p312) target = $region20
        $region19: #{tpu_custom_call.1} parent=11 // pred_region
          %316 = vsyncadd [#allocation3], 0
          %s317 = sshll.u32 %s3, 4
          %s318 = int_to_ptr.hbm [resolvable:$true] %s317
          %s319 = sshll.u32 [#allocation7], 4
          %s320 = int_to_ptr.vmem [resolvable:$true] %s319
          %325 = dma.hbm_to_vmem [thread:$0]  %s318, 512, %s320, [#allocation3], 128, 128, 8
        $region20: #{tpu_custom_call.1} parent=11 // pred_fallthru
          _
        // Predicated region
        $region21: #{tpu_custom_call.1} parent=11 // pred_check
          %p326 = pneg %p135
        $region22: #{tpu_custom_call.1} parent=11 // pred_check_branch
          %328 = sbr.rel (%p326) target = $region24
        $region23: #{tpu_custom_call.1} parent=11 // pred_region
          _
        $region24: #{tpu_custom_call.1} parent=11 // pred_fallthru
          _
        // Predicated region
        $region25: #{tpu_custom_call.1} parent=11 // pred_check
          %p329 = pneg %p156
        $region26: #{tpu_custom_call.1} parent=11 // pred_check_branch
          %331 = sbr.rel (%p329) target = $region28
        $region27: #{tpu_custom_call.1} parent=11 // pred_region
          _
        $region28: #{tpu_custom_call.1} parent=11 // pred_fallthru
          _
        // Predicated region
        $region29: #{tpu_custom_call.1} parent=11 // pred_check
          %p332 = pneg %p177
        $region30: #{tpu_custom_call.1} parent=11 // pred_check_branch
          %334 = sbr.rel (%p332) target = $region32
        $region31: #{tpu_custom_call.1} parent=11 // pred_region
          _
        $region32: #{tpu_custom_call.1} parent=11 // pred_fallthru
          _
        // Predicated region
        $region33: #{tpu_custom_call.1} parent=11 // pred_check
          %p335 = pneg %p198
        $region34: #{tpu_custom_call.1} parent=11 // pred_check_branch
          %337 = sbr.rel (%p335) target = $region36
        $region35: #{tpu_custom_call.1} parent=11 // pred_region
          %339 = vsyncadd [#allocation9], 0
          %s340 = sshll.u32 %s7, 4
          %s341 = int_to_ptr.hbm [resolvable:$true] %s340
          %s342 = sshll.u32 [#allocation8], 4
          %s343 = int_to_ptr.vmem [resolvable:$true] %s342
          %348 = dma.hbm_to_vmem [thread:$0]  %s341, 512, %s343, [#allocation9], 128, 128, 8
        $region36: #{tpu_custom_call.1} parent=11 // pred_fallthru
          _
        // Predicated region
        $region37: #{tpu_custom_call.1} parent=11 // pred_check
          %p349 = pneg %p219
        $region38: #{tpu_custom_call.1} parent=11 // pred_check_branch
          %351 = sbr.rel (%p349) target = $region40
        $region39: #{tpu_custom_call.1} parent=11 // pred_region
          _
        $region40: #{tpu_custom_call.1} parent=11 // pred_fallthru
          _
        // Predicated region
        $region41: #{tpu_custom_call.1} parent=11 // pred_check
          %p352 = pneg %p240
        $region42: #{tpu_custom_call.1} parent=11 // pred_check_branch
          %354 = sbr.rel (%p352) target = $region44
        $region43: #{tpu_custom_call.1} parent=11 // pred_region
          _
        $region44: #{tpu_custom_call.1} parent=11 // pred_fallthru
          _
        // Predicated region
        $region45: #{tpu_custom_call.1} parent=11 // pred_check
          %p355 = pneg %p261
        $region46: #{tpu_custom_call.1} parent=11 // pred_check_branch
          %357 = sbr.rel (%p355) target = $region48
        $region47: #{tpu_custom_call.1} parent=11 // pred_region
          _
        $region48: #{tpu_custom_call.1} parent=11 // pred_fallthru
          _
      $region12: #{tpu_custom_call.1} parent=5 // pred_fallthru
        _
      %p358 = scmp.lt.s32.totalorder %s20, 2
      // Predicated region
      $region49: #{tpu_custom_call.1} parent=5 // pred_check
        %p359 = pneg %p358
      $region50: #{tpu_custom_call.1} parent=5 // pred_check_branch
        %361 = sbr.rel (%p359) target = $region52
      $region51: #{tpu_custom_call.1} parent=5 // pred_region
        // Predicated region
        $region53: #{tpu_custom_call.1} parent=51 // pred_check
          %p362 = pneg %p61
        $region54: #{tpu_custom_call.1} parent=51 // pred_check_branch
          %364 = sbr.rel (%p362) target = $region56
        $region55: #{tpu_custom_call.1} parent=51 // pred_region
          %s365 = sand.u32 %s51, 1
          %s366 = sand.u32 %s51, 1
          %s367 = smul.addr %s366, 48
          %s368 = scalar_lea.vmem [#allocation5], %s367
          %s369 = smul.addr %s20, 2
          %s370 = smul.addr %s369, 8
          %s371 = scalar_lea.vmem %s1, %s370
          // Predicated region
          $region57: #{tpu_custom_call.1} parent=55 // pred_check
            _
          $region58: #{tpu_custom_call.1} parent=55 // pred_check_branch
            %373 = sbr.rel (0) target = $region60
          $region59: #{tpu_custom_call.1} parent=55 // pred_region
            // Predicated region
            $region61: #{tpu_custom_call.1} parent=59 // pred_check
              _
            $region62: #{tpu_custom_call.1} parent=59 // pred_check_branch
              %375 = sbr.rel (0) target = $region64
            $region63: #{tpu_custom_call.1} parent=59 // pred_region
              // Predicated region
              $region76: #{tpu_custom_call.1} parent=63 // pred_check
                _
              $region77: #{tpu_custom_call.1} parent=63 // pred_check_branch
                %401 = sbr.rel (0) target = $region79
              $region78: #{tpu_custom_call.1} parent=63 // pred_region
                loop: start=0, step=1, limit=1
                $region80: #{tpu_custom_call.1} parent=78 // loop_pre_header
                  _
                $region81: #{tpu_custom_call.1} parent=78 // loop_header
                  %s403 = sphi 0, %s407
                  %p404 = scmp.ge.s32.totalorder %s403, 1
                  %s408 = sphi %s371, %s371
                  %s409 = sphi %s368, %s368
                $region82: #{tpu_custom_call.1} parent=78 // loop_header_branch
                  %406 = sbr.rel (%p404) target = $region86
                $region83: #{tpu_custom_call.1} parent=78 // loop_body
                  %v410 = vld [vmem:[%s408] sm:$0xff]
                  %411 = vst [vmem:[%s409] sm:$0xff] %v410
                  %v412 = vld [vmem:[%s408 + $0x8] sm:$0xff]
                  %413 = vst [vmem:[%s409 + $0x8] sm:$0xff] %v412
                  %v414 = vld [vmem:[%s408 + $0x20] sm:$0xff]
                  %415 = vst [vmem:[%s409 + $0x10] sm:$0xff] %v414
                  %v416 = vld [vmem:[%s408 + $0x28] sm:$0xff]
                  %417 = vst [vmem:[%s409 + $0x18] sm:$0xff] %v416
                  %v418 = vld [vmem:[%s408 + $0x40] sm:$0xff]
                  %419 = vst [vmem:[%s409 + $0x20] sm:$0xff] %v418
                  %v420 = vld [vmem:[%s408 + $0x48] sm:$0xff]
                  %421 = vst [vmem:[%s409 + $0x28] sm:$0xff] %v420
                $region84: #{tpu_custom_call.1} parent=78 // loop_footer
                  %s407 = sadd.s32 1, %s403
                $region85: #{tpu_custom_call.1} parent=78 // loop_footer_branch
                  %402 = sbr.rel target = $region81
                $region86: #{tpu_custom_call.1} parent=78 // loop_exit
                  _
              $region79: #{tpu_custom_call.1} parent=63 // pred_fallthru
                _
              // Predicated region
              $region87: #{tpu_custom_call.1} parent=63 // pred_check
                _
              $region88: #{tpu_custom_call.1} parent=63 // pred_check_branch
                %423 = sbr.rel target = $region90
              $region89: #{tpu_custom_call.1} parent=63 // pred_region
                _
              $region90: #{tpu_custom_call.1} parent=63 // pred_fallthru
                _
            $region64: #{tpu_custom_call.1} parent=59 // pred_fallthru
              _
            // Predicated region
            $region65: #{tpu_custom_call.1} parent=59 // pred_check
              _
            $region66: #{tpu_custom_call.1} parent=59 // pred_check_branch
              %377 = sbr.rel target = $region68
            $region67: #{tpu_custom_call.1} parent=59 // pred_region
              %s379 = ssub.s32 256, 1
              loop: start=0, step=1, limit=1
              $region69: #{tpu_custom_call.1} parent=67 // loop_pre_header
                _
              $region70: #{tpu_custom_call.1} parent=67 // loop_header
                %s381 = sphi 0, %s385
                %p382 = scmp.ge.s32.totalorder %s381, 1
                %s386 = sphi %s371, %s371
                %s387 = sphi %s368, %s368
              $region71: #{tpu_custom_call.1} parent=67 // loop_header_branch
                %384 = sbr.rel (%p382) target = $region75
              $region72: #{tpu_custom_call.1} parent=67 // loop_body
                %v388 = vld [vmem:[%s386] sm:%s379]
                %389 = vst [vmem:[%s387] sm:%s379] %v388
                %v390 = vld [vmem:[%s386 + $0x8] sm:%s379]
                %391 = vst [vmem:[%s387 + $0x8] sm:%s379] %v390
                %v392 = vld [vmem:[%s386 + $0x20] sm:%s379]
                %393 = vst [vmem:[%s387 + $0x10] sm:%s379] %v392
                %v394 = vld [vmem:[%s386 + $0x28] sm:%s379]
                %395 = vst [vmem:[%s387 + $0x18] sm:%s379] %v394
                %v396 = vld [vmem:[%s386 + $0x40] sm:%s379]
                %397 = vst [vmem:[%s387 + $0x20] sm:%s379] %v396
                %v398 = vld [vmem:[%s386 + $0x48] sm:%s379]
                %399 = vst [vmem:[%s387 + $0x28] sm:%s379] %v398
              $region73: #{tpu_custom_call.1} parent=67 // loop_footer
                %s385 = sadd.s32 1, %s381
              $region74: #{tpu_custom_call.1} parent=67 // loop_footer_branch
                %380 = sbr.rel target = $region70
              $region75: #{tpu_custom_call.1} parent=67 // loop_exit
                _
            $region68: #{tpu_custom_call.1} parent=59 // pred_fallthru
              _
          $region60: #{tpu_custom_call.1} parent=55 // pred_fallthru
            _
          %424 = vnop
        $region56: #{tpu_custom_call.1} parent=51 // pred_fallthru
          _
        // Predicated region
        $region91: #{tpu_custom_call.1} parent=51 // pred_check
          %p425 = pneg %p87
        $region92: #{tpu_custom_call.1} parent=51 // pred_check_branch
          %427 = sbr.rel (%p425) target = $region94
        $region93: #{tpu_custom_call.1} parent=51 // pred_region
          %s428 = sand.u32 %s77, 1
          %s429 = sand.u32 %s77, 1
          %s430 = smul.addr %s429, 24
          %s431 = scalar_lea.vmem [#allocation6], %s430
          %s432 = smul.addr %s20, 8
          %s433 = scalar_lea.vmem %s2, %s432
          // Predicated region
          $region95: #{tpu_custom_call.1} parent=93 // pred_check
            _
          $region96: #{tpu_custom_call.1} parent=93 // pred_check_branch
            %435 = sbr.rel (0) target = $region98
          $region97: #{tpu_custom_call.1} parent=93 // pred_region
            // Predicated region
            $region99: #{tpu_custom_call.1} parent=97 // pred_check
              _
            $region100: #{tpu_custom_call.1} parent=97 // pred_check_branch
              %437 = sbr.rel (0) target = $region102
            $region101: #{tpu_custom_call.1} parent=97 // pred_region
              // Predicated region
              $region114: #{tpu_custom_call.1} parent=101 // pred_check
                _
              $region115: #{tpu_custom_call.1} parent=101 // pred_check_branch
                %457 = sbr.rel (0) target = $region117
              $region116: #{tpu_custom_call.1} parent=101 // pred_region
                loop: start=0, step=1, limit=1
                $region118: #{tpu_custom_call.1} parent=116 // loop_pre_header
                  _
                $region119: #{tpu_custom_call.1} parent=116 // loop_header
                  %s459 = sphi 0, %s463
                  %p460 = scmp.ge.s32.totalorder %s459, 1
                  %s464 = sphi %s433, %s433
                  %s465 = sphi %s431, %s431
                $region120: #{tpu_custom_call.1} parent=116 // loop_header_branch
                  %462 = sbr.rel (%p460) target = $region124
                $region121: #{tpu_custom_call.1} parent=116 // loop_body
                  %v466 = vld [vmem:[%s464] sm:$0xff]
                  %467 = vst [vmem:[%s465] sm:$0xff] %v466
                  %v468 = vld [vmem:[%s464 + $0x10] sm:$0xff]
                  %469 = vst [vmem:[%s465 + $0x8] sm:$0xff] %v468
                  %v470 = vld [vmem:[%s464 + $0x20] sm:$0xff]
                  %471 = vst [vmem:[%s465 + $0x10] sm:$0xff] %v470
                $region122: #{tpu_custom_call.1} parent=116 // loop_footer
                  %s463 = sadd.s32 1, %s459
                $region123: #{tpu_custom_call.1} parent=116 // loop_footer_branch
                  %458 = sbr.rel target = $region119
                $region124: #{tpu_custom_call.1} parent=116 // loop_exit
                  _
              $region117: #{tpu_custom_call.1} parent=101 // pred_fallthru
                _
              // Predicated region
              $region125: #{tpu_custom_call.1} parent=101 // pred_check
                _
              $region126: #{tpu_custom_call.1} parent=101 // pred_check_branch
                %473 = sbr.rel target = $region128
              $region127: #{tpu_custom_call.1} parent=101 // pred_region
                _
              $region128: #{tpu_custom_call.1} parent=101 // pred_fallthru
                _
            $region102: #{tpu_custom_call.1} parent=97 // pred_fallthru
              _
            // Predicated region
            $region103: #{tpu_custom_call.1} parent=97 // pred_check
              _
            $region104: #{tpu_custom_call.1} parent=97 // pred_check_branch
              %439 = sbr.rel target = $region106
            $region105: #{tpu_custom_call.1} parent=97 // pred_region
              %s441 = ssub.s32 256, 1
              loop: start=0, step=1, limit=1
              $region107: #{tpu_custom_call.1} parent=105 // loop_pre_header
                _
              $region108: #{tpu_custom_call.1} parent=105 // loop_header
                %s443 = sphi 0, %s447
                %p444 = scmp.ge.s32.totalorder %s443, 1
                %s448 = sphi %s433, %s433
                %s449 = sphi %s431, %s431
              $region109: #{tpu_custom_call.1} parent=105 // loop_header_branch
                %446 = sbr.rel (%p444) target = $region113
              $region110: #{tpu_custom_call.1} parent=105 // loop_body
                %v450 = vld [vmem:[%s448] sm:%s441]
                %451 = vst [vmem:[%s449] sm:%s441] %v450
                %v452 = vld [vmem:[%s448 + $0x10] sm:%s441]
                %453 = vst [vmem:[%s449 + $0x8] sm:%s441] %v452
                %v454 = vld [vmem:[%s448 + $0x20] sm:%s441]
                %455 = vst [vmem:[%s449 + $0x10] sm:%s441] %v454
              $region111: #{tpu_custom_call.1} parent=105 // loop_footer
                %s447 = sadd.s32 1, %s443
              $region112: #{tpu_custom_call.1} parent=105 // loop_footer_branch
                %442 = sbr.rel target = $region108
              $region113: #{tpu_custom_call.1} parent=105 // loop_exit
                _
            $region106: #{tpu_custom_call.1} parent=97 // pred_fallthru
              _
          $region98: #{tpu_custom_call.1} parent=93 // pred_fallthru
            _
          %474 = vnop
        $region94: #{tpu_custom_call.1} parent=51 // pred_fallthru
          _
      $region52: #{tpu_custom_call.1} parent=5 // pred_fallthru
        _
      %p475 = scmp.le.s32.totalorder 1, %s20
      %p476 = scmp.lt.s32.totalorder %s20, 3
      %p477 = pnand %p475, %p476
      %p478 = pneg %p477
      // Predicated region
      $region129: #{tpu_custom_call.1} parent=5 // pred_check
        _
      $region130: #{tpu_custom_call.1} parent=5 // pred_check_branch
        %480 = sbr.rel (%p477) target = $region132
      $region131: #{tpu_custom_call.1} parent=5 // pred_region
        %s481 = ssub.s32 %s20, 1
        // Predicated region
        $region133: #{tpu_custom_call.1} parent=131 // pred_check
          %p482 = pneg %p41
        $region134: #{tpu_custom_call.1} parent=131 // pred_check_branch
          %484 = sbr.rel (%p482) target = $region136
        $region135: #{tpu_custom_call.1} parent=131 // pred_region
          %486 = dma.done [#allocation4], 16
        $region136: #{tpu_custom_call.1} parent=131 // pred_fallthru
          _
        %s487 = sand.u32 %s54, 1
        %s488 = sand.u32 %s54, 1
        %s489 = smul.addr %s488, 48
        %s490 = scalar_lea.vmem [#allocation5], %s489
        // Predicated region
        $region137: #{tpu_custom_call.1} parent=131 // pred_check
          %p491 = pneg %p67
        $region138: #{tpu_custom_call.1} parent=131 // pred_check_branch
          %493 = sbr.rel (%p491) target = $region140
        $region139: #{tpu_custom_call.1} parent=131 // pred_region
          _
        $region140: #{tpu_custom_call.1} parent=131 // pred_fallthru
          _
        %s494 = sand.u32 %s80, 1
        %s495 = sand.u32 %s80, 1
        %s496 = smul.addr %s495, 24
        %s497 = scalar_lea.vmem [#allocation6], %s496
        // Predicated region
        $region141: #{tpu_custom_call.1} parent=131 // pred_check
          %p498 = pneg %p93
        $region142: #{tpu_custom_call.1} parent=131 // pred_check_branch
          %500 = sbr.rel (%p498) target = $region144
        $region143: #{tpu_custom_call.1} parent=131 // pred_region
          _
        $region144: #{tpu_custom_call.1} parent=131 // pred_fallthru
          _
        // Predicated region
        $region145: #{tpu_custom_call.1} parent=131 // pred_check
          %p501 = pneg %p114
        $region146: #{tpu_custom_call.1} parent=131 // pred_check_branch
          %503 = sbr.rel (%p501) target = $region148
        $region147: #{tpu_custom_call.1} parent=131 // pred_region
          %505 = dma.done [#allocation3], 512
        $region148: #{tpu_custom_call.1} parent=131 // pred_fallthru
          _
        // Predicated region
        $region149: #{tpu_custom_call.1} parent=131 // pred_check
          %p506 = pneg %p198
        $region150: #{tpu_custom_call.1} parent=131 // pred_check_branch
          %508 = sbr.rel (%p506) target = $region152
        $region151: #{tpu_custom_call.1} parent=131 // pred_region
          %510 = dma.done [#allocation9], 512
        $region152: #{tpu_custom_call.1} parent=131 // pred_fallthru
          _
        %511 = sfence
        %p512 = pneg %p41
        %p513 = pneg %p38
        %s514 = sand.u32 %s54, 1
        %s515 = sand.u32 %s54, 1
        %s516 = smul.addr %s515, 48
        %s517 = scalar_lea.vmem [#allocation5], %s516
        %p518 = pneg %p67
        %p519 = pneg %p64
        %s520 = sand.u32 %s80, 1
        %s521 = sand.u32 %s80, 1
        %s522 = smul.addr %s521, 24
        %s523 = scalar_lea.vmem [#allocation6], %s522
        %p524 = pneg %p93
        %p525 = pneg %p90
        %p526 = pneg %p114
        %p527 = pneg %p111
        %p528 = pneg %p135
        %p529 = pneg %p132
        %p530 = pneg %p156
        %p531 = pneg %p153
        %p532 = pneg %p177
        %p533 = pneg %p174
        %p534 = pneg %p198
        %p535 = pneg %p195
        %p536 = pneg %p219
        %p537 = pneg %p216
        %p538 = pneg %p240
        %p539 = pneg %p237
        %p540 = pneg %p261
        %p541 = pneg %p258
        %p542 = pneg %p287
        %p543 = pneg %p284
        %p544 = scmp.lt.s32.totalorder %s25, 1
        %s545 = scalar_select %p544, %s25, 1
        %s546 = smul.addr %s545, 2
        %s547 = smul.addr %s546, 8
        %s548 = scalar_lea.vmem %s11, %s547
        %p549 = scmp.lt.s32.totalorder %s25, 1
        %s550 = scalar_select %p549, %s25, 1
        %s551 = smul.addr %s550, 2
        %s552 = smul.addr %s551, 8
        %s553 = scalar_lea.vmem %s11, %s552
        %v554 = vld [vmem:[%s490] sm:$0xff]
        %v555 = vld [vmem:[%s490 + $0x8] sm:$0xff]
        %v556 = vld [vmem:[%s490 + $0x10] sm:$0xff]
        %v557 = vld [vmem:[%s490 + $0x18] sm:$0xff]
        %v558 = vld [vmem:[%s490 + $0x20] sm:$0xff]
        %v559 = vld [vmem:[%s490 + $0x28] sm:$0xff]
        %v560 = vld [vmem:[#allocation7] sm:$0xff]
        %v561 = vld [vmem:[#allocation7 + $0x8] sm:$0xff]
        %v562 = vld [vmem:[#allocation7 + $0x10] sm:$0xff]
        %v563 = vld [vmem:[#allocation7 + $0x18] sm:$0xff]
        %v564 = vld [vmem:[%s4] sm:$0x1]
        %v566 = vperm.slane %v564, 0
        %vm568 = vcmask 261120
        %v570 = vsel %vm568, %v554, 0
        %v573 = vsel %vm568, %v555, 0
        %v576 = vsel %vm568, %v556, 0
        %v579 = vsel %vm568, %v557, 0
        %v582 = vsel %vm568, %v558, 0
        %v585 = vsel %vm568, %v559, 0
        %587 = vmatpush.msra.mxu0 0.0
        %588 = vmatpush.msra.mxu0 0.0
        %589 = vmatpush.msra.mxu0 0.0
        %590 = vmatpush.msra.mxu0 0.0
        %591 = vmatpush.msra.mxu0 0.0
        %592 = vmatpush.msra.mxu0 0.0
        %593 = vmatpush.msra.mxu0 0.0
        %594 = vmatpush.msra.mxu0 0.0
        %595 = vmatpush.msra.mxu0 0.0
        %596 = vmatpush.msra.mxu0 0.0
        %597 = vmatpush.msra.mxu0 0.0
        %598 = vmatpush.msra.mxu0 0.0
        %599 = vmatpush.msra.mxu0 %v563
        %600 = vmatpush.msra.mxu0 %v562
        %601 = vmatpush.msra.mxu0 %v561
        %602 = vmatpush.msra.mxu0 %v560
        %603 = vmatmul.f32.gmra.mxu0 %v570
        %v604 = vpop.f32.mrf.mxu0
        %v605 = vadd.f32 %v566, %v604
        %606 = vmatmul.f32.gmra.mxu0 %v573
        %v607 = vpop.f32.mrf.mxu0
        %v608 = vadd.f32 %v566, %v607
        %609 = vmatmul.f32.gmra.mxu0 %v576
        %v610 = vpop.f32.mrf.mxu0
        %v611 = vadd.f32 %v566, %v610
        %612 = vmatmul.f32.gmra.mxu0 %v579
        %v613 = vpop.f32.mrf.mxu0
        %v614 = vadd.f32 %v566, %v613
        %615 = vmatmul.f32.gmra.mxu0 %v582
        %v616 = vpop.f32.mrf.mxu0
        %v617 = vadd.f32 %v566, %v616
        %618 = vmatmul.f32.gmra.mxu0 %v585
        %v619 = vpop.f32.mrf.mxu0
        %v620 = vadd.f32 %v566, %v619
        %621 = vdwg.mxu0
        %v622 = vmax.f32 %v605, 0.0
        %v623 = vmax.f32 %v608, 0.0
        %v624 = vmax.f32 %v611, 0.0
        %v625 = vmax.f32 %v614, 0.0
        %v626 = vmax.f32 %v617, 0.0
        %v627 = vmax.f32 %v620, 0.0
        %v628 = vld [vmem:[%s5] sm:$0xff]
        %v629 = vld [vmem:[%s5 + $0x8] sm:$0xff]
        %v630 = vld [vmem:[%s5 + $0x10] sm:$0xff]
        %v631 = vld [vmem:[%s5 + $0x18] sm:$0xff]
        %v632 = vld [vmem:[%s5 + $0x20] sm:$0xff]
        %v633 = vld [vmem:[%s5 + $0x28] sm:$0xff]
        %v634 = vld [vmem:[%s5 + $0x30] sm:$0xff]
        %v635 = vld [vmem:[%s5 + $0x38] sm:$0xff]
        %v636 = vld [vmem:[%s6] sm:$0x1]
        %v638 = vperm.slane %v636, 0
        %vm640 = vcmask 523264
        %v642 = vsel %vm640, %v622, 0
        %v645 = vsel %vm640, %v623, 0
        %v648 = vsel %vm640, %v624, 0
        %v651 = vsel %vm640, %v625, 0
        %v654 = vsel %vm640, %v626, 0
        %v657 = vsel %vm640, %v627, 0
        %659 = vmatpush.msra.mxu0 0.0
        %660 = vmatpush.msra.mxu0 0.0
        %661 = vmatpush.msra.mxu0 0.0
        %662 = vmatpush.msra.mxu0 0.0
        %663 = vmatpush.msra.mxu0 0.0
        %664 = vmatpush.msra.mxu0 0.0
        %665 = vmatpush.msra.mxu0 0.0
        %666 = vmatpush.msra.mxu0 0.0
        %667 = vmatpush.msra.mxu0 %v635
        %668 = vmatpush.msra.mxu0 %v634
        %669 = vmatpush.msra.mxu0 %v633
        %670 = vmatpush.msra.mxu0 %v632
        %671 = vmatpush.msra.mxu0 %v631
        %672 = vmatpush.msra.mxu0 %v630
        %673 = vmatpush.msra.mxu0 %v629
        %674 = vmatpush.msra.mxu0 %v628
        %675 = vmatmul.f32.gmra.mxu0 %v642
        %v676 = vpop.f32.mrf.mxu0
        %v677 = vadd.f32 %v638, %v676
        %678 = vmatmul.f32.gmra.mxu0 %v645
        %v679 = vpop.f32.mrf.mxu0
        %v680 = vadd.f32 %v638, %v679
        %681 = vmatmul.f32.gmra.mxu0 %v648
        %v682 = vpop.f32.mrf.mxu0
        %v683 = vadd.f32 %v638, %v682
        %684 = vmatmul.f32.gmra.mxu0 %v651
        %v685 = vpop.f32.mrf.mxu0
        %v686 = vadd.f32 %v638, %v685
        %687 = vmatmul.f32.gmra.mxu0 %v654
        %v688 = vpop.f32.mrf.mxu0
        %v689 = vadd.f32 %v638, %v688
        %690 = vmatmul.f32.gmra.mxu0 %v657
        %v691 = vpop.f32.mrf.mxu0
        %v692 = vadd.f32 %v638, %v691
        %693 = vdwg.mxu0
        %v694 = vld [vmem:[%s497] sm:$0xff]
        %v695 = vld [vmem:[%s497 + $0x8] sm:$0xff]
        %v696 = vld [vmem:[%s497 + $0x10] sm:$0xff]
        %v697 = vld [vmem:[#allocation8] sm:$0xff]
        %v698 = vld [vmem:[#allocation8 + $0x8] sm:$0xff]
        %v699 = vld [vmem:[#allocation8 + $0x10] sm:$0xff]
        %v700 = vld [vmem:[#allocation8 + $0x18] sm:$0xff]
        %v701 = vld [vmem:[%s8] sm:$0x1]
        %v703 = vperm.slane %v701, 0
        %v706 = vsel %vm568, %v694, 0
        %v709 = vsel %vm568, %v695, 0
        %v712 = vsel %vm568, %v696, 0
        %714 = vmatpush.msra.mxu0 0.0
        %715 = vmatpush.msra.mxu0 0.0
        %716 = vmatpush.msra.mxu0 0.0
        %717 = vmatpush.msra.mxu0 0.0
        %718 = vmatpush.msra.mxu0 0.0
        %719 = vmatpush.msra.mxu0 0.0
        %720 = vmatpush.msra.mxu0 0.0
        %721 = vmatpush.msra.mxu0 0.0
        %722 = vmatpush.msra.mxu0 0.0
        %723 = vmatpush.msra.mxu0 0.0
        %724 = vmatpush.msra.mxu0 0.0
        %725 = vmatpush.msra.mxu0 0.0
        %726 = vmatpush.msra.mxu0 %v700
        %727 = vmatpush.msra.mxu0 %v699
        %728 = vmatpush.msra.mxu0 %v698
        %729 = vmatpush.msra.mxu0 %v697
        %730 = vmatmul.f32.gmra.mxu0 %v706
        %v731 = vpop.f32.mrf.mxu0
        %v732 = vadd.f32 %v703, %v731
        %733 = vmatmul.f32.gmra.mxu0 %v709
        %v734 = vpop.f32.mrf.mxu0
        %v735 = vadd.f32 %v703, %v734
        %736 = vmatmul.f32.gmra.mxu0 %v712
        %v737 = vpop.f32.mrf.mxu0
        %v738 = vadd.f32 %v703, %v737
        %739 = vdwg.mxu0
        %v740 = vmax.f32 %v732, 0.0
        %v741 = vmax.f32 %v735, 0.0
        %v742 = vmax.f32 %v738, 0.0
        %v743 = vld [vmem:[%s9] sm:$0xff]
        %v744 = vld [vmem:[%s9 + $0x8] sm:$0xff]
        %v745 = vld [vmem:[%s9 + $0x10] sm:$0xff]
        %v746 = vld [vmem:[%s9 + $0x18] sm:$0xff]
        %v747 = vld [vmem:[%s9 + $0x20] sm:$0xff]
        %v748 = vld [vmem:[%s9 + $0x28] sm:$0xff]
        %v749 = vld [vmem:[%s9 + $0x30] sm:$0xff]
        %v750 = vld [vmem:[%s9 + $0x38] sm:$0xff]
        %v751 = vld [vmem:[%s10] sm:$0x1]
        %v753 = vperm.slane %v751, 0
        %v756 = vsel %vm640, %v740, 0
        %v759 = vsel %vm640, %v741, 0
        %v762 = vsel %vm640, %v742, 0
        %764 = vmatpush.msra.mxu0 0.0
        %765 = vmatpush.msra.mxu0 0.0
        %766 = vmatpush.msra.mxu0 0.0
        %767 = vmatpush.msra.mxu0 0.0
        %768 = vmatpush.msra.mxu0 0.0
        %769 = vmatpush.msra.mxu0 0.0
        %770 = vmatpush.msra.mxu0 0.0
        %771 = vmatpush.msra.mxu0 0.0
        %772 = vmatpush.msra.mxu0 %v750
        %773 = vmatpush.msra.mxu0 %v749
        %774 = vmatpush.msra.mxu0 %v748
        %775 = vmatpush.msra.mxu0 %v747
        %776 = vmatpush.msra.mxu0 %v746
        %777 = vmatpush.msra.mxu0 %v745
        %778 = vmatpush.msra.mxu0 %v744
        %779 = vmatpush.msra.mxu0 %v743
        %780 = vmatmul.f32.gmra.mxu0 %v756
        %v781 = vpop.f32.mrf.mxu0
        %v782 = vadd.f32 %v753, %v781
        %783 = vmatmul.f32.gmra.mxu0 %v759
        %v784 = vpop.f32.mrf.mxu0
        %v785 = vadd.f32 %v753, %v784
        %786 = vmatmul.f32.gmra.mxu0 %v762
        %v787 = vpop.f32.mrf.mxu0
        %v788 = vadd.f32 %v753, %v787
        %789 = vdwg.mxu0
        %v791 = vsel %vm568, %v677, 0
        %v794 = vsel %vm568, %v680, 0
        %v797 = vsel %vm568, %v782, 0
        %799 = vmatpush.xpose.msra.mxu0 0.0
        %800 = vmatpush.xpose.msra.mxu0 0.0
        %801 = vmatpush.xpose.msra.mxu0 0.0
        %802 = vmatpush.xpose.msra.mxu0 0.0
        %803 = vmatpush.xpose.msra.mxu0 0.0
        %804 = vmatpush.xpose.msra.mxu0 0.0
        %805 = vmatpush.xpose.msra.mxu0 0.0
        %806 = vmatpush.xpose.msra.mxu0 0.0
        %807 = vmatpush.xpose.msra.mxu0 0.0
        %808 = vmatpush.xpose.msra.mxu0 0.0
        %809 = vmatpush.xpose.msra.mxu0 0.0
        %810 = vmatpush.xpose.msra.mxu0 0.0
        %811 = vmatpush.xpose.msra.mxu0 0.0
        %812 = vmatpush.xpose.msra.mxu0 0.0
        %813 = vmatpush.xpose.msra.mxu0 0.0
        %814 = vmatpush.xpose.msra.mxu0 %v797
        %815 = vmatmul.f32.gmra.mxu0 %v791
        %v816 = vpop.f32.mrf.mxu0
        %v817 = vadd.f32 0.0, %v816
        %818 = vmatmul.f32.gmra.mxu0 %v794
        %v819 = vpop.f32.mrf.mxu0
        %v820 = vadd.f32 0.0, %v819
        %821 = vdwg.mxu0
        %v823 = vsel %vm568, %v683, 0
        %v826 = vsel %vm568, %v686, 0
        %v829 = vsel %vm568, %v785, 0
        %831 = vmatpush.xpose.msra.mxu0 0.0
        %832 = vmatpush.xpose.msra.mxu0 0.0
        %833 = vmatpush.xpose.msra.mxu0 0.0
        %834 = vmatpush.xpose.msra.mxu0 0.0
        %835 = vmatpush.xpose.msra.mxu0 0.0
        %836 = vmatpush.xpose.msra.mxu0 0.0
        %837 = vmatpush.xpose.msra.mxu0 0.0
        %838 = vmatpush.xpose.msra.mxu0 0.0
        %839 = vmatpush.xpose.msra.mxu0 0.0
        %840 = vmatpush.xpose.msra.mxu0 0.0
        %841 = vmatpush.xpose.msra.mxu0 0.0
        %842 = vmatpush.xpose.msra.mxu0 0.0
        %843 = vmatpush.xpose.msra.mxu0 0.0
        %844 = vmatpush.xpose.msra.mxu0 0.0
        %845 = vmatpush.xpose.msra.mxu0 0.0
        %846 = vmatpush.xpose.msra.mxu0 %v829
        %847 = vmatmul.f32.gmra.mxu0 %v823
        %v848 = vpop.f32.mrf.mxu0
        %v849 = vadd.f32 0.0, %v848
        %850 = vmatmul.f32.gmra.mxu0 %v826
        %v851 = vpop.f32.mrf.mxu0
        %v852 = vadd.f32 0.0, %v851
        %853 = vdwg.mxu0
        %v855 = vsel %vm568, %v689, 0
        %v858 = vsel %vm568, %v692, 0
        %v861 = vsel %vm568, %v788, 0
        %863 = vmatpush.xpose.msra.mxu0 0.0
        %864 = vmatpush.xpose.msra.mxu0 0.0
        %865 = vmatpush.xpose.msra.mxu0 0.0
        %866 = vmatpush.xpose.msra.mxu0 0.0
        %867 = vmatpush.xpose.msra.mxu0 0.0
        %868 = vmatpush.xpose.msra.mxu0 0.0
        %869 = vmatpush.xpose.msra.mxu0 0.0
        %870 = vmatpush.xpose.msra.mxu0 0.0
        %871 = vmatpush.xpose.msra.mxu0 0.0
        %872 = vmatpush.xpose.msra.mxu0 0.0
        %873 = vmatpush.xpose.msra.mxu0 0.0
        %874 = vmatpush.xpose.msra.mxu0 0.0
        %875 = vmatpush.xpose.msra.mxu0 0.0
        %876 = vmatpush.xpose.msra.mxu0 0.0
        %877 = vmatpush.xpose.msra.mxu0 0.0
        %878 = vmatpush.xpose.msra.mxu0 %v861
        %879 = vmatmul.f32.gmra.mxu0 %v855
        %v880 = vpop.f32.mrf.mxu0
        %v881 = vadd.f32 0.0, %v880
        %882 = vmatmul.f32.gmra.mxu0 %v858
        %v883 = vpop.f32.mrf.mxu0
        %v884 = vadd.f32 0.0, %v883
        %885 = vdwg.mxu0
        %s886 = sld [smem:[#allocation2]]
        %v887 = vstv %s886
        %v888 = vmul.f32 %v887, %v817
        %v889 = vmul.f32 %v887, %v820
        %s890 = sld [smem:[#allocation2 + $0x1]]
        %v891 = vstv %s890
        %v892 = vmul.f32 %v891, %v849
        %v893 = vmul.f32 %v891, %v852
        %v894 = vadd.f32 %v888, %v892
        %v895 = vadd.f32 %v889, %v893
        %s896 = sld [smem:[#allocation2 + $0x2]]
        %v897 = vstv %s896
        %v898 = vmul.f32 %v897, %v881
        %v899 = vmul.f32 %v897, %v884
        %v900 = vadd.f32 %v894, %v898
        %v901 = vadd.f32 %v895, %v899
        %vm902 = vcmask 64512
        %903 = vst.msk [vmem:[%s553] sm:$0xff] %vm902, %v900
        %904 = vst.msk [vmem:[%s553 + $0x8] sm:$0xff] %vm902, %v901
        %p905 = scmp.lt.s32.totalorder %s25, 1
        %s906 = scalar_select %p905, %s25, 1
        %s907 = smul.addr %s906, 2
        %s908 = smul.addr %s907, 8
        %s909 = scalar_lea.vmem %s11, %s908
        // Predicated region
        $region153: #{tpu_custom_call.1} parent=131 // pred_check
          %p910 = pneg %p284
        $region154: #{tpu_custom_call.1} parent=131 // pred_check_branch
          %912 = sbr.rel (%p910) target = $region156
        $region155: #{tpu_custom_call.1} parent=131 // pred_region
          _
        $region156: #{tpu_custom_call.1} parent=131 // pred_fallthru
          _
      $region132: #{tpu_custom_call.1} parent=5 // pred_fallthru
        _
      %p913 = scmp.le.s32.totalorder 2, %s20
      // Predicated region
      $region157: #{tpu_custom_call.1} parent=5 // pred_check
        %p914 = pneg %p913
      $region158: #{tpu_custom_call.1} parent=5 // pred_check_branch
        %916 = sbr.rel (%p914) target = $region160
      $region159: #{tpu_custom_call.1} parent=5 // pred_region
        %s917 = ssub.s32 %s20, 2
        // Predicated region
        $region161: #{tpu_custom_call.1} parent=159 // pred_check
          %p918 = pneg %p290
        $region162: #{tpu_custom_call.1} parent=159 // pred_check_branch
          %920 = sbr.rel (%p918) target = $region164
        $region163: #{tpu_custom_call.1} parent=159 // pred_region
          %p921 = scmp.lt.s32.totalorder %s26, 1
          %s922 = scalar_select %p921, %s26, 1
          %s923 = smul.addr %s922, 2
          %s924 = smul.addr %s923, 8
          %s925 = scalar_lea.vmem %s11, %s924
        $region164: #{tpu_custom_call.1} parent=159 // pred_fallthru
          _
      $region160: #{tpu_custom_call.1} parent=5 // pred_fallthru
        _
    $region6: #{tpu_custom_call.1} parent=1 // loop_footer
      %s24 = sadd.s32 1, %s20
    $region7: #{tpu_custom_call.1} parent=1 // loop_footer_branch
      %19 = sbr.rel target = $region3
    $region8: #{tpu_custom_call.1} parent=1 // loop_exit
      _
    %926 = vsyncpa [#allocation3], 1
    %s927 = scalar_lea.sflag [#allocation3], 1
    %928 = vsyncpa %s927, 1
    %929 = vsyncpa [#allocation9], 1
    %930 = vsyncpa [#allocation4], 1
    %s931 = scalar_lea.sflag [#allocation4], 1
    %932 = vsyncpa %s931, 1

</llo_original>
